<compile_context>
chip_gen: v5e
topology: v5e:2x2
jax: 0.10.0
libtpu: 0.0.40
codegen_flags: <defaults>
</compile_context>

<pallas_src>
import functools
import math

import numpy as np

import jax
import jax.numpy as jnp
from jax.experimental import pallas as pl
from jax.experimental.pallas import tpu as pltpu


LANE = 128  # pad C_out to a multiple of this (lane-dense output stores)


def _round_up(x, n):
    return ((x + n - 1) // n) * n


def _tpu_sizing():
    """Per-generation VMEM limit and default tile sizes."""
    try:
        cap = int(pltpu.get_tpu_info().vmem_capacity_bytes)
    except Exception:
        cap = 64 * 1024 * 1024              # conservative (v7x-sized) fallback
    vmem_limit = int(min(cap * 3 // 4, 100 * 1024 * 1024))
    big = cap >= 100 * 1024 * 1024          # v5e / v6e (128 MiB physical VMEM)
    tile_m = 2048 if big else 1024          # k=1: rows per block
    tile_rows = 48 if big else 32           # k=3: output image rows per block
    return vmem_limit, tile_m, tile_rows


# ----------------------------------------------------------------------------
# Shared epilogue: folded-BN bias add + numerically stable SiLU, bf16 store
# ----------------------------------------------------------------------------
def _bias_act_store(z, b_ref, o_ref, apply_act):
    z = z + b_ref[...]                                  # f32
    if apply_act:
        # stable sigmoid: exp argument is always <= 0
        e = jnp.exp(-jnp.abs(z))
        inv = pl.reciprocal(1.0 + e, approx=True)       # EUP slot
        z = z * jnp.where(z >= 0.0, inv, e * inv)
    o_ref[...] = z.astype(o_ref.dtype)                  # single bf16 store


# ----------------------------------------------------------------------------
# k=1 kernel: plain fused GEMM + BN bias + SiLU (auto-pipelined BlockSpecs)
# ----------------------------------------------------------------------------
def _conv1x1_kernel(x_ref, w_ref, b_ref, o_ref, *, apply_act):
    z = jnp.dot(x_ref[...], w_ref[...], preferred_element_type=jnp.float32)
    _bias_act_store(z, b_ref, o_ref, apply_act)


def _conv1x1_call(x2d, w, bias, *, tm, apply_act, vmem_limit):
    m_pad, cin = x2d.shape
    _, cp = w.shape
    assert m_pad % tm == 0
    nblk = m_pad // tm
    kern = functools.partial(_conv1x1_kernel, apply_act=apply_act)
    return pl.pallas_call(
        kern,
        out_shape=jax.ShapeDtypeStruct((m_pad, cp), jnp.bfloat16),
        grid_spec=pltpu.PrefetchScalarGridSpec(
            num_scalar_prefetch=0,
            grid=(nblk,),
            in_specs=[
                pl.BlockSpec((tm, cin), lambda i: (i, 0)),
                # grid-invariant weight/bias stay VMEM-resident; for very large
                # layers on v7x, add a Cout grid axis and pl.Buffered(1) here.
                pl.BlockSpec((cin, cp), lambda i: (0, 0)),
                pl.BlockSpec((1, cp), lambda i: (0, 0)),
            ],
            out_specs=pl.BlockSpec((tm, cp), lambda i: (i, 0)),
        ),
        compiler_params=pltpu.CompilerParams(
            dimension_semantics=("parallel",),
            vmem_limit_bytes=vmem_limit),
        cost_estimate=pl.CostEstimate(
            flops=int(2 * m_pad * cin * cp),
            transcendentals=int(2 * m_pad * cp) if apply_act else 0,
            bytes_accessed=int(x2d.size * 2 + w.size * 2 + bias.size * 4
                               + m_pad * cp * 2)),
    )(x2d, w, bias)


# ----------------------------------------------------------------------------
# k=3 kernel: manual double-buffered halo DMA + one K=9*Cin matmul per block
# ----------------------------------------------------------------------------
def _conv3x3_kernel(x_hbm, w_ref, b_ref, o_ref, xbuf, sem, *,
                    offsets, m_out, l_fetch, hb, apply_act):
    # x_hbm:  (N, L_total, Cin)      bf16, zero-padded flat activations in HBM
    # w_ref:  (9*Cin, Cout_pad)      bf16 tap-concatenated folded weight
    # b_ref:  (1, Cout_pad)          f32 folded BN bias
    # o_ref:  (m_out, Cout_pad)      bf16 output tile (lane-dense)
    # xbuf:   (2, l_fetch, Cin)      bf16 double-buffered halo window
    # sem:    DMA semaphores (2,)
    b = pl.program_id(0)
    r = pl.program_id(1)
    slot = r % 2

    def start_fetch(row_blk, into_slot):
        pltpu.make_async_copy(
            x_hbm.at[b, pl.ds(row_blk * m_out, l_fetch)],
            xbuf.at[into_slot],
            sem.at[into_slot]).start()

    @pl.when(r == 0)                       # prime the pipeline (per batch elt,
    def _():                               # so a "parallel" batch axis is safe)
        start_fetch(0, slot)

    @pl.when(r + 1 < hb)                   # prefetch next row block
    def _():
        start_fetch(r + 1, 1 - slot)

    pltpu.make_async_copy(                 # wait for the current window
        x_hbm.at[0, pl.ds(0, l_fetch)], xbuf.at[slot], sem.at[slot]).wait()

    win = xbuf[slot]                       # (l_fetch, Cin) bf16, no f32 upcast
    # One (m_out, 9*Cin) bf16 LHS tile: 9 row-shifted views of the flat window
    # concatenated along lanes -> single MXU contraction with K = 9*Cin.
    lhs = jnp.concatenate([win[off:off + m_out, :] for off in offsets], axis=1)
    z = jnp.dot(lhs, w_ref[...], preferred_element_type=jnp.float32)
    _bias_act_store(z, b_ref, o_ref, apply_act)


def _conv3x3_call(x_flat, w_cat, bias, *, n, hb, m_out, l_fetch, offsets,
                  apply_act, vmem_limit):
    _, _, cin = x_flat.shape
    kcin, cp = w_cat.shape
    nsteps = n * hb
    kern = functools.partial(_conv3x3_kernel, offsets=tuple(int(o) for o in offsets),
                             m_out=m_out, l_fetch=l_fetch, hb=hb,
                             apply_act=apply_act)
    return pl.pallas_call(
        kern,
        out_shape=jax.ShapeDtypeStruct((nsteps * m_out, cp), jnp.bfloat16),
        grid_spec=pltpu.PrefetchScalarGridSpec(
            num_scalar_prefetch=0,
            grid=(n, hb),
            in_specs=[
                pl.BlockSpec(memory_space=pl.ANY),              # raw HBM ref
                pl.BlockSpec((kcin, cp), lambda b, r: (0, 0)),  # resident weight
                pl.BlockSpec((1, cp), lambda b, r: (0, 0)),     # resident bias
            ],
            out_specs=pl.BlockSpec((m_out, cp), lambda b, r: (b * hb + r, 0)),
            scratch_shapes=[
                pltpu.VMEM((2, l_fetch, cin), jnp.bfloat16),    # halo window x2
                pltpu.SemaphoreType.DMA((2,)),
            ],
        ),
        compiler_params=pltpu.CompilerParams(
            # batch axis parallel (megacore); row-block axis carries the manual
            # DMA prefetch chain and must stay sequential.
            dimension_semantics=("parallel", "arbitrary"),
            vmem_limit_bytes=vmem_limit),
        cost_estimate=pl.CostEstimate(
            flops=int(2 * nsteps * m_out * kcin * cp),
            transcendentals=int(2 * nsteps * m_out * cp) if apply_act else 0,
            bytes_accessed=int(nsteps * l_fetch * cin * 2 + w_cat.size * 2
                               + bias.size * 4 + nsteps * m_out * cp * 2)),
    )(x_flat, w_cat, bias)


# ----------------------------------------------------------------------------
# Parameter packing: fold inference BatchNorm, tap-concat rows, pad C_out
# ----------------------------------------------------------------------------
def pack_conv_params(w_hwio, gamma, beta, mean, var, eps=1e-5):
    """w_hwio: (k, k, Cin, Cout) f32.
    Returns bf16 tap-concatenated weight (k*k*Cin, Cout_pad), padded f32 bias
    (1, Cout_pad) and the unpadded folded params for the reference."""
    kh, kw, cin, cout = w_hwio.shape
    scale = gamma / jnp.sqrt(var + eps)
    w_f = (w_hwio * scale[None, None, None, :]).astype(jnp.float32)
    b_f = (beta - mean * scale).astype(jnp.float32)
    cp = _round_up(cout, LANE)
    w_pad = jnp.pad(w_f, ((0, 0), (0, 0), (0, 0), (0, cp - cout)))
    b_pad = jnp.pad(b_f, ((0, cp - cout),))
    # row index = (dh*kw + dw)*Cin + ci  -> matches the kernel's LHS lane order
    w_cat = w_pad.reshape(kh * kw * cin, cp).astype(jnp.bfloat16)
    bias = b_pad.reshape(1, cp)
    return w_cat, bias, w_f, b_f


# ----------------------------------------------------------------------------
# Wrapper: forward of `Conv` (k in {1,3}, s=1, autopad, g=1, d=1, bias=False)
# ----------------------------------------------------------------------------
def conv_forward(x_nchw, w_cat, bias, c_out, *, k=1, act=True):
    """SiLU(BN(Conv2d(x))), NCHW f32 in / NCHW f32 out (matches PyTorch)."""
    n, c_in, h, w = x_nchw.shape
    kcin, cp = w_cat.shape
    assert kcin == k * k * c_in
    vmem_limit, tile_m, tile_rows = _tpu_sizing()

    # TODO(synk): in a full network keep activations NHWC/bf16 end-to-end and
    # fold the c_out slice into the next layer's read instead of transposing
    # NCHW<->NHWC around every call (each transpose is a full HBM pass).
    x_nhwc = jnp.transpose(x_nchw, (0, 2, 3, 1)).astype(jnp.bfloat16)

    if k == 1:
        m = n * h * w
        # deep-enough grid (>= ~8 steps) with a tiny zero-padded tail
        nblk = max(pl.cdiv(m, tile_m), min(8, pl.cdiv(m, 8)))
        tm = _round_up(pl.cdiv(m, nblk), 8)
        m_pad = _round_up(m, tm)
        x2d = x_nhwc.reshape(m, c_in)
        if m_pad != m:
            x2d = jnp.pad(x2d, ((0, m_pad - m), (0, 0)))
        out2d = _conv1x1_call(x2d, w_cat, bias, tm=tm, apply_act=act,
                              vmem_limit=vmem_limit)
        out = out2d[:m, :c_out].reshape(n, h, w, c_out)

    elif k == 3:
        we = w + 2
        # m_out = th*we must be a multiple of 8 (sublane dim of the out block)
        step = 8 // math.gcd(we, 8)
        th = max(step, (min(h, tile_rows) // step) * step)
        # deepen the grid when N * row_blocks would be tiny (pipelining + v7x)
        while th > step and n * pl.cdiv(h, th) < 8:
            th = max(step, ((th // 2) // step) * step)
        hb = pl.cdiv(h, th)
        h_pad = hb * th
        m_out = th * we                      # includes 2 junk columns per row
        l_win = (th + 2) * we                # halo window in flat rows
        l_fetch = _round_up(l_win + 2, 8)    # + last tap's column spill-over
        extra = pl.cdiv(l_fetch - l_win, we)
        # single pad covers conv halo + row-block tail + DMA over-fetch; the
        # flatten below merges contiguous dims and is free (no HBM gather).
        x_padded = jnp.pad(
            x_nhwc, ((0, 0), (1, 1 + (h_pad - h) + extra), (1, 1), (0, 0)))
        x_flat = x_padded.reshape(n, (h_pad + 2 + extra) * we, c_in)
        offsets = tuple(dh * we + dw for dh in range(3) for dw in range(3))
        out2d = _conv3x3_call(x_flat, w_cat, bias, n=n, hb=hb, m_out=m_out,
                              l_fetch=l_fetch, offsets=offsets, apply_act=act,
                              vmem_limit=vmem_limit)
        out = out2d.reshape(n, h_pad, we, cp)[:, :h, :w, :c_out]

    else:
        # TODO(synk): k not in {1,3}, stride>1, groups>1, dilation>1 and custom
        # act modules are not implemented in the Pallas path.
        raise NotImplementedError(f"k={k} not supported")

    return jnp.transpose(out, (0, 3, 1, 2)).astype(jnp.float32)


# ----------------------------------------------------------------------------
# Pure-JAX reference (same folded params, same bf16 rounding of matmul inputs
# and of the kernel's bf16 output)
# ----------------------------------------------------------------------------
def reference_conv(x_nchw, w_folded_hwio, b_folded, act=True):
    x = jnp.transpose(x_nchw, (0, 2, 3, 1)).astype(jnp.bfloat16).astype(jnp.float32)
    wf = w_folded_hwio.astype(jnp.bfloat16).astype(jnp.float32)
    z = jax.lax.conv_general_dilated(
        x, wf, window_strides=(1, 1), padding="SAME",
        dimension_numbers=("NHWC", "HWIO", "NHWC"))
    z = z + b_folded.reshape(1, 1, 1, -1)
    if act:
        z = z * jax.nn.sigmoid(z)
    z = z.astype(jnp.bfloat16).astype(jnp.float32)   # kernel emits bf16
    return jnp.transpose(z, (0, 3, 1, 2))


if __name__ == "__main__":
    key = jax.random.PRNGKey(0)
    kx, kw1, kw3 = jax.random.split(key, 3)

    # Small config; C_out is zero-padded to 128 lanes inside the wrapper.
    N, C1, H, W = 2, 32, 16, 16
    C2 = 64
    x = jax.random.normal(kx, (N, C1, H, W), jnp.float32)

    def synth_bn(c, salt):
        gamma = 1.0 + 0.05 * jnp.arange(c, dtype=jnp.float32)
        beta = 0.01 * (salt + 1) * jnp.ones((c,), jnp.float32)
        mean = 0.02 * jnp.arange(c, dtype=jnp.float32)
        var = 1.0 + 0.03 * jnp.arange(c, dtype=jnp.float32)
        return gamma, beta, mean, var

    # Exercise both common `Conv` configurations: k=1 (module default) and k=3.
    for ksz, kkey in ((1, kw1), (3, kw3)):
        wraw = jax.random.normal(kkey, (ksz, ksz, C1, C2), jnp.float32)
        wraw = wraw / float(np.sqrt(ksz * ksz * C1))
        w_cat, bias, w_f, b_f = pack_conv_params(wraw, *synth_bn(C2, ksz))

        out = jax.block_until_ready(conv_forward(x, w_cat, bias, C2, k=ksz))
        assert out.shape == (N, C2, H, W)
        assert bool(jnp.all(jnp.isfinite(out)))

        ref = jax.block_until_ready(reference_conv(x, w_f, b_f))
        np.testing.assert_allclose(np.asarray(out), np.asarray(ref),
                                   rtol=2e-2, atol=2e-2)

    print("KERNEL_OK")
</pallas_src>

<mosaic_0001>
module attributes {stable_mosaic.version = 11 : i64} {
  func.func @_conv1x1_kernel(%arg0: i32, %arg1: memref<64x32xbf16, #tpu.memory_space<vmem>>, %arg2: memref<32x128xbf16, #tpu.memory_space<vmem>>, %arg3: memref<1x128xf32, #tpu.memory_space<vmem>>, %arg4: memref<64x128xbf16, #tpu.memory_space<vmem>>) attributes {dimension_semantics = [#tpu.dimension_semantics<parallel>], iteration_bounds = array<i64: 8>, scalar_prefetch = 0 : i64, scratch_operands = 0 : i64, tpu.core_type = #tpu.core_type<tc>, window_params = [{transform_indices = @transform_0, window_bounds = array<i64: 64, 32>}, {pipeline_mode = #tpu.pipeline_mode<synchronous>, transform_indices = @transform_1, window_bounds = array<i64: 32, 128>}, {pipeline_mode = #tpu.pipeline_mode<synchronous>, transform_indices = @transform_2, window_bounds = array<i64: 1, 128>}, {transform_indices = @transform_3, window_bounds = array<i64: 64, 128>}]} {
    %c0 = arith.constant 0 : index
    %c0_0 = arith.constant 0 : index
    %0 = vector.load %arg1[%c0, %c0_0] : memref<64x32xbf16, #tpu.memory_space<vmem>>, vector<64x32xbf16>
    %c0_1 = arith.constant 0 : index
    %c0_2 = arith.constant 0 : index
    %1 = vector.load %arg2[%c0_1, %c0_2] : memref<32x128xbf16, #tpu.memory_space<vmem>>, vector<32x128xbf16>
    %cst = arith.constant dense<0.000000e+00> : vector<64x128xf32>
    %2 = tpu.matmul %0, %1, %cst {dimension_numbers = #tpu.dot_dimension_numbers<[1], [0], [0], [1], [0, 0, 1, 1], [], []>} : vector<64x32xbf16>, vector<32x128xbf16>, vector<64x128xf32> -> vector<64x128xf32>
    %c0_3 = arith.constant 0 : index
    %c0_4 = arith.constant 0 : index
    %3 = vector.load %arg3[%c0_3, %c0_4] : memref<1x128xf32, #tpu.memory_space<vmem>>, vector<1x128xf32>
    %4 = vector.broadcast %3 : vector<1x128xf32> to vector<64x128xf32>
    %5 = arith.addf %2, %4 : vector<64x128xf32>
    %6 = math.absf %5 : vector<64x128xf32>
    %cst_5 = arith.constant 0.000000e+00 : f32
    %7 = vector.broadcast %cst_5 : f32 to vector<64x128xf32>
    %8 = arith.subf %7, %6 : vector<64x128xf32>
    %9 = math.exp %8 : vector<64x128xf32>
    %cst_6 = arith.constant 1.000000e+00 : f32
    %10 = vector.broadcast %cst_6 : f32 to vector<64x128xf32>
    %11 = arith.addf %10, %9 : vector<64x128xf32>
    %12 = tpu.reciprocal %11 {approx = true} : vector<64x128xf32> -> vector<64x128xf32>
    %cst_7 = arith.constant 0.000000e+00 : f32
    %13 = vector.broadcast %cst_7 : f32 to vector<64x128xf32>
    %14 = arith.cmpf oge, %5, %13 : vector<64x128xf32>
    %15 = arith.mulf %9, %12 : vector<64x128xf32>
    %16 = arith.select %14, %12, %15 : vector<64x128xi1>, vector<64x128xf32>
    %17 = arith.mulf %5, %16 : vector<64x128xf32>
    %18 = arith.truncf %17 : vector<64x128xf32> to vector<64x128xbf16>
    %c0_8 = arith.constant 0 : index
    %c0_9 = arith.constant 0 : index
    %19 = vector.load %arg4[%c0_8, %c0_9] : memref<64x128xbf16, #tpu.memory_space<vmem>>, vector<64x128xbf16>
    tpu.vector_store %arg4[%c0_8, %c0_9], %18 {strides = array<i32>} : memref<64x128xbf16, #tpu.memory_space<vmem>>, vector<64x128xbf16>,
    return
  }
  func.func @transform_0(%arg0: i32) -> (i32, i32) {
    %c0_i32 = arith.constant 0 : i32
    %c0_i32_0 = arith.constant 0 : i32
    return %arg0, %c0_i32 : i32, i32
  }
  func.func @transform_1(%arg0: i32) -> (i32, i32) {
    %c0_i32 = arith.constant 0 : i32
    %c0_i32_0 = arith.constant 0 : i32
    %c0_i32_1 = arith.constant 0 : i32
    return %c0_i32, %c0_i32_0 : i32, i32
  }
  func.func @transform_2(%arg0: i32) -> (i32, i32) {
    %c0_i32 = arith.constant 0 : i32
    %c0_i32_0 = arith.constant 0 : i32
    %c0_i32_1 = arith.constant 0 : i32
    return %c0_i32, %c0_i32_0 : i32, i32
  }
  func.func @transform_3(%arg0: i32) -> (i32, i32) {
    %c0_i32 = arith.constant 0 : i32
    %c0_i32_0 = arith.constant 0 : i32
    return %arg0, %c0_i32 : i32, i32
  }
}

</mosaic_0001>

<llo_original>
// kernel: tpu_custom_call.1
$region0: #{tpu_custom_call.1}
  #allocation0 [shape = 'u32[]', space=smem, size = 0x4, offset = 0x4, fixed_abs, tag = 'smem constant byte address 0x4 - core index']
  #allocation1 [shape = 'u32[72,128]{1,0:T(1,128)}', space=vmem, size = 0x9000, scoped, tag = 'internal scratch']
  %s0 = inlined_call_operand.vmem [shape: bf16[512,32], index: 0, kind: input, shape index: {}]
  %s1 = inlined_call_operand.vmem [shape: bf16[32,128], index: 1, kind: input, shape index: {}]
  %s2 = inlined_call_operand.vmem [shape: f32[1,128], index: 2, kind: input, shape index: {}]
  %s3 = inlined_call_operand.hbm [shape: bf16[512,128], index: 3, kind: output, shape index: {}]
  %s4 = sld [smem:[#allocation0]]
  $region45: #{tpu_custom_call.1} parent=0
    _
  %s6 = ssub.s32 1, %s4
  %s7 = scalar_select 0, %s6, %s4
  $region1: #{tpu_custom_call.1} parent=0
    #allocation2 [shape = 'u8[32768]{0}', space=vmem, size = 0x8000, scoped, tag = 'output window, operand 0']
    #allocation3 [shape = 's32[2]{0}', space=sflag, size = 0x8, scoped, tag = 'scoped memory for tpu_custom_call.1']
    %8 = vsyncpa [#allocation3], 0
    %s9 = scalar_lea.sflag [#allocation3], 1
    %10 = vsyncpa %s9, 0
    loop: start=0, step=1, limit=10
    $region2: #{tpu_custom_call.1} parent=1 // loop_pre_header
      _
    $region3: #{tpu_custom_call.1} parent=1 // loop_header
      %s12 = sphi 0, %s16
      %p13 = scmp.ge.s32.totalorder %s12, 10
      %s22 = sphi 0, %s24
      %s25 = sphi 0, %s22
      %s26 = sphi 0, %s25
      %s42 = sphi 0, %s26
      %s46 = sphi 0, %s46
      %s48 = sphi 0, %s46
      %s49 = sphi 0, %s48
      %s63 = sphi 0, %s49
      %s67 = sphi 0, %s67
      %s69 = sphi 0, %s67
      %s70 = sphi 0, %s69
      %s84 = sphi 0, %s70
      %s90 = sphi 0, %s92
      %s93 = sphi 0, %s90
      %s94 = sphi 0, %s93
      %s110 = sphi 0, %s94
    $region4: #{tpu_custom_call.1} parent=1 // loop_header_branch
      %15 = sbr.rel (%p13) target = $region8
    $region5: #{tpu_custom_call.1} parent=1 // loop_body
      %s17 = ssub.s32 %s12, 1
      %s18 = ssub.s32 %s12, 2
      %s19 = sadd.s32 %s12, 1
      %s20 = ssub.s32 %s12, %s19
      %p21 = scmp.eq.s32.totalorder %s20, 0
      %s23 = sadd.s32 %s22, 1
      %s24 = scalar_select %p21, %s22, %s23
      %p27 = pneg %p21
      %p28 = scmp.eq.s32.totalorder %s12, 7
      %p29 = por %p27, %p28
      %p30 = scmp.ne.s32.totalorder %s22, %s25
      %p31 = scmp.eq.s32.totalorder %s12, 0
      %p32 = por %p30, %p31
      %p33 = scmp.ne.s32.totalorder %s22, %s25
      %p34 = scmp.eq.s32.totalorder %s17, 7
      %p35 = por %p33, %p34
      %p36 = scmp.ne.s32.totalorder %s25, %s26
      %p37 = scmp.eq.s32.totalorder %s17, 0
      %p38 = por %p36, %p37
      %p39 = scmp.ne.s32.totalorder %s25, %s26
      %p40 = scmp.eq.s32.totalorder %s18, 7
      %p41 = por %p39, %p40
      %p43 = scmp.ne.s32.totalorder %s26, %s42
      %p44 = scmp.eq.s32.totalorder %s18, 0
      %p45 = por %p43, %p44
      %s47 = sadd.s32 %s46, 1
      %p50 = scmp.eq.s32.totalorder %s12, 7
      %p51 = scmp.ne.s32.totalorder %s46, %s48
      %p52 = scmp.eq.s32.totalorder %s12, 0
      %p53 = por %p51, %p52
      %p54 = scmp.ne.s32.totalorder %s46, %s48
      %p55 = scmp.eq.s32.totalorder %s17, 7
      %p56 = por %p54, %p55
      %p57 = scmp.ne.s32.totalorder %s48, %s49
      %p58 = scmp.eq.s32.totalorder %s17, 0
      %p59 = por %p57, %p58
      %p60 = scmp.ne.s32.totalorder %s48, %s49
      %p61 = scmp.eq.s32.totalorder %s18, 7
      %p62 = por %p60, %p61
      %p64 = scmp.ne.s32.totalorder %s49, %s63
      %p65 = scmp.eq.s32.totalorder %s18, 0
      %p66 = por %p64, %p65
      %s68 = sadd.s32 %s67, 1
      %p71 = scmp.eq.s32.totalorder %s12, 7
      %p72 = scmp.ne.s32.totalorder %s67, %s69
      %p73 = scmp.eq.s32.totalorder %s12, 0
      %p74 = por %p72, %p73
      %p75 = scmp.ne.s32.totalorder %s67, %s69
      %p76 = scmp.eq.s32.totalorder %s17, 7
      %p77 = por %p75, %p76
      %p78 = scmp.ne.s32.totalorder %s69, %s70
      %p79 = scmp.eq.s32.totalorder %s17, 0
      %p80 = por %p78, %p79
      %p81 = scmp.ne.s32.totalorder %s69, %s70
      %p82 = scmp.eq.s32.totalorder %s18, 7
      %p83 = por %p81, %p82
      %p85 = scmp.ne.s32.totalorder %s70, %s84
      %p86 = scmp.eq.s32.totalorder %s18, 0
      %p87 = por %p85, %p86
      %s88 = ssub.s32 %s12, %s19
      %p89 = scmp.eq.s32.totalorder %s88, 0
      %s91 = sadd.s32 %s90, 1
      %s92 = scalar_select %p89, %s90, %s91
      %p95 = pneg %p89
      %p96 = scmp.eq.s32.totalorder %s12, 7
      %p97 = por %p95, %p96
      %p98 = scmp.ne.s32.totalorder %s90, %s93
      %p99 = scmp.eq.s32.totalorder %s12, 0
      %p100 = por %p98, %p99
      %p101 = scmp.ne.s32.totalorder %s90, %s93
      %p102 = scmp.eq.s32.totalorder %s17, 7
      %p103 = por %p101, %p102
      %p104 = scmp.ne.s32.totalorder %s93, %s94
      %p105 = scmp.eq.s32.totalorder %s17, 0
      %p106 = por %p104, %p105
      %p107 = scmp.ne.s32.totalorder %s93, %s94
      %p108 = scmp.eq.s32.totalorder %s18, 7
      %p109 = por %p107, %p108
      %p111 = scmp.ne.s32.totalorder %s94, %s110
      %p112 = scmp.eq.s32.totalorder %s18, 0
      %p113 = por %p111, %p112
      %p114 = scmp.le.s32.totalorder 1, %s12
      %p115 = scmp.lt.s32.totalorder %s12, 9
      %p116 = pnand %p114, %p115
      %p117 = pneg %p116
      // Predicated region
      $region9: #{tpu_custom_call.1} parent=5 // pred_check
        _
      $region10: #{tpu_custom_call.1} parent=5 // pred_check_branch
        %119 = sbr.rel (%p116) target = $region12
      $region11: #{tpu_custom_call.1} parent=5 // pred_region
        %s120 = ssub.s32 %s12, 1
        // Predicated region
        $region13: #{tpu_custom_call.1} parent=11 // pred_check
          %p121 = pneg %p59
        $region14: #{tpu_custom_call.1} parent=11 // pred_check_branch
          %123 = sbr.rel (%p121) target = $region16
        $region15: #{tpu_custom_call.1} parent=11 // pred_region
          _
        $region16: #{tpu_custom_call.1} parent=11 // pred_fallthru
          _
        // Predicated region
        $region17: #{tpu_custom_call.1} parent=11 // pred_check
          %p124 = pneg %p80
        $region18: #{tpu_custom_call.1} parent=11 // pred_check_branch
          %126 = sbr.rel (%p124) target = $region20
        $region19: #{tpu_custom_call.1} parent=11 // pred_region
          _
        $region20: #{tpu_custom_call.1} parent=11 // pred_fallthru
          _
      $region12: #{tpu_custom_call.1} parent=5 // pred_fallthru
        _
      %p127 = scmp.lt.s32.totalorder %s12, 8
      // Predicated region
      $region21: #{tpu_custom_call.1} parent=5 // pred_check
        %p128 = pneg %p127
      $region22: #{tpu_custom_call.1} parent=5 // pred_check_branch
        %130 = sbr.rel (%p128) target = $region24
      $region23: #{tpu_custom_call.1} parent=5 // pred_region
        // Predicated region
        $region25: #{tpu_custom_call.1} parent=23 // pred_check
          %p131 = pneg %p32
        $region26: #{tpu_custom_call.1} parent=23 // pred_check_branch
          %133 = sbr.rel (%p131) target = $region28
        $region27: #{tpu_custom_call.1} parent=23 // pred_region
          %s134 = smul.u32 8, %s12
          %p135 = scmp.lt.s32.totalorder %s134, 63
          %s136 = scalar_select %p135, %s134, 63
          %s137 = smul.addr %s136, 4
          %s138 = scalar_lea.vmem %s0, %s137
          %s139 = smul.u32 8, %s12
        $region28: #{tpu_custom_call.1} parent=23 // pred_fallthru
          _
      $region24: #{tpu_custom_call.1} parent=5 // pred_fallthru
        _
      %p140 = scmp.le.s32.totalorder 1, %s12
      %p141 = scmp.lt.s32.totalorder %s12, 9
      %p142 = pnand %p140, %p141
      %p143 = pneg %p142
      // Predicated region
      $region29: #{tpu_custom_call.1} parent=5 // pred_check
        _
      $region30: #{tpu_custom_call.1} parent=5 // pred_check_branch
        %145 = sbr.rel (%p142) target = $region32
      $region31: #{tpu_custom_call.1} parent=5 // pred_region
        %s146 = ssub.s32 %s12, 1
        %s147 = smul.u32 8, %s17
        %p148 = scmp.lt.s32.totalorder %s147, 63
        %s149 = scalar_select %p148, %s147, 63
        %s150 = smul.addr %s149, 4
        %s151 = scalar_lea.vmem %s0, %s150
        %p152 = pneg %p38
        %p153 = pneg %p35
        %p154 = pneg %p59
        %p155 = pneg %p56
        %p156 = pneg %p80
        %p157 = pneg %p77
        %p158 = pneg %p106
        %p159 = pneg %p103
        %s160 = sand.u32 %s93, 1
        %s161 = scalar_lea.sflag [#allocation3], %s160
        %s162 = sand.u32 %s93, 1
        %s163 = smul.addr %s162, 32
        %s164 = scalar_lea.vmem [#allocation2], %s163
        %s165 = smul.u32 8, %s17
        %p166 = scmp.lt.s32.totalorder %s165, 63
        %s167 = scalar_select %p166, %s165, 63
        %s168 = smul.addr %s167, 4
        %s169 = scalar_lea.vmem %s0, %s168
        %s170 = smul.u32 8, %s17
        %s171 = smul.u32 8, %s17
        %v173 = vld [vmem:[%s169] sm:$0xf]
        %v174 = vld [vmem:[%s169 + $0x4] sm:$0xf]
        %v175 = vld [vmem:[%s169 + $0x8] sm:$0xf]
        %v176 = vld [vmem:[%s169 + $0xc] sm:$0xf]
        %v177 = vld [vmem:[%s169 + $0x10] sm:$0xf]
        %v178 = vld [vmem:[%s169 + $0x14] sm:$0xf]
        %v179 = vld [vmem:[%s169 + $0x18] sm:$0xf]
        %v180 = vld [vmem:[%s169 + $0x1c] sm:$0xf]
        %v181 = vld [vmem:[%s1] sm:$0xf]
        %v182 = vld [vmem:[%s1 + $0x4] sm:$0xf]
        %v183 = vld [vmem:[%s1 + $0x8] sm:$0xf]
        %v184 = vld [vmem:[%s1 + $0xc] sm:$0xf]
        %v185 = vld [vmem:[%s2] sm:$0x1]
        %v187 = vperm.slane %v185, 0
        %v197 = vunpack.c.l.b16 %v173
        %v198 = vunpack.c.l.b16 %v174
        %v199 = vunpack.c.l.b16 %v175
        %v200 = vunpack.c.l.b16 %v176
        %v201 = vunpack.c.l.b16 %v177
        %v202 = vunpack.c.l.b16 %v178
        %v203 = vunpack.c.l.b16 %v179
        %v204 = vunpack.c.l.b16 %v180
        %v205 = vpack.c.b16 %v198, %v197
        %v206 = vpack.c.b16 %v200, %v199
        %v207 = vpack.c.b16 %v202, %v201
        %v208 = vpack.c.b16 %v204, %v203
        %v213 = vunpack.c.l.b16 %v181
        %v214 = vunpack.c.l.b16 %v182
        %v215 = vunpack.c.l.b16 %v183
        %v216 = vunpack.c.l.b16 %v184
        %v217 = vpack.c.b16 %v214, %v213
        %v218 = vpack.c.b16 %v216, %v215
        %vm221 = vcmask 261120
        %v223 = vsel %vm221, %v205, 0
        %v226 = vsel %vm221, %v206, 0
        %v229 = vsel %vm221, %v207, 0
        %v232 = vsel %vm221, %v208, 0
        %234 = vmatpush.bf16.msra.mxu0 0
        %235 = vmatpush.bf16.msra.mxu0 0
        %236 = vmatpush.bf16.msra.mxu0 0
        %237 = vmatpush.bf16.msra.mxu0 0
        %238 = vmatpush.bf16.msra.mxu0 0
        %239 = vmatpush.bf16.msra.mxu0 0
        %240 = vmatpush.bf16.msra.mxu0 %v218
        %241 = vmatpush.bf16.msra.mxu0 %v217
        %242 = vmatmul.bf16.gmra.mxu0 %v223
        %v243 = vpop.f32.mrf.mxu0
        %v244 = vadd.f32 %v187, %v243
        %v245 = vpop.f32.mrf.mxu0
        %v246 = vadd.f32 %v187, %v245
        %247 = vmatmul.bf16.gmra.mxu0 %v226
        %v248 = vpop.f32.mrf.mxu0
        %v249 = vadd.f32 %v187, %v248
        %v250 = vpop.f32.mrf.mxu0
        %v251 = vadd.f32 %v187, %v250
        %252 = vmatmul.bf16.gmra.mxu0 %v229
        %v253 = vpop.f32.mrf.mxu0
        %v254 = vadd.f32 %v187, %v253
        %v255 = vpop.f32.mrf.mxu0
        %v256 = vadd.f32 %v187, %v255
        %257 = vmatmul.bf16.gmra.mxu0 %v232
        %v258 = vpop.f32.mrf.mxu0
        %v259 = vadd.f32 %v187, %v258
        %v260 = vpop.f32.mrf.mxu0
        %v261 = vadd.f32 %v187, %v260
        %262 = vdwg.mxu0
        %v263 = vand.u32 2147483647, %v244
        %v264 = vand.u32 2147483647, %v246
        %v265 = vand.u32 2147483647, %v249
        %v266 = vand.u32 2147483647, %v251
        %v267 = vand.u32 2147483647, %v254
        %v268 = vand.u32 2147483647, %v256
        %v269 = vand.u32 2147483647, %v259
        %v270 = vand.u32 2147483647, %v261
        %v271 = vsub.f32 0.0, %v263
        %v272 = vsub.f32 0.0, %v264
        %v273 = vsub.f32 0.0, %v265
        %v274 = vsub.f32 0.0, %v266
        %v275 = vsub.f32 0.0, %v267
        %v276 = vsub.f32 0.0, %v268
        %v277 = vsub.f32 0.0, %v269
        %v278 = vsub.f32 0.0, %v270
        %v279 = vmul.f32 %v271, 1.442695
        %v280 = vpow.pop %v279
        %v281 = vmul.f32 %v272, 1.442695
        %v282 = vpow.pop %v281
        %v283 = vmul.f32 %v273, 1.442695
        %v284 = vpow.pop %v283
        %v285 = vmul.f32 %v274, 1.442695
        %v286 = vpow.pop %v285
        %v287 = vmul.f32 %v275, 1.442695
        %v288 = vpow.pop %v287
        %v289 = vmul.f32 %v276, 1.442695
        %v290 = vpow.pop %v289
        %v291 = vmul.f32 %v277, 1.442695
        %v292 = vpow.pop %v291
        %v293 = vmul.f32 %v278, 1.442695
        %v294 = vpow.pop %v293
        %v295 = vadd.f32 %v280, 1.0
        %v296 = vadd.f32 %v282, 1.0
        %v297 = vadd.f32 %v284, 1.0
        %v298 = vadd.f32 %v286, 1.0
        %v299 = vadd.f32 %v288, 1.0
        %v300 = vadd.f32 %v290, 1.0
        %v301 = vadd.f32 %v292, 1.0
        %v302 = vadd.f32 %v294, 1.0
        %v303 = vrcp.pop %v295
        %v304 = vrcp.pop %v296
        %v305 = vrcp.pop %v297
        %v306 = vrcp.pop %v298
        %v307 = vrcp.pop %v299
        %v308 = vrcp.pop %v300
        %v309 = vrcp.pop %v301
        %v310 = vrcp.pop %v302
        %vm311 = vcmp.ge.f32.partialorder %v244, 0.0
        %vm312 = vcmp.ge.f32.partialorder %v246, 0.0
        %vm313 = vcmp.ge.f32.partialorder %v249, 0.0
        %vm314 = vcmp.ge.f32.partialorder %v251, 0.0
        %vm315 = vcmp.ge.f32.partialorder %v254, 0.0
        %vm316 = vcmp.ge.f32.partialorder %v256, 0.0
        %vm317 = vcmp.ge.f32.partialorder %v259, 0.0
        %vm318 = vcmp.ge.f32.partialorder %v261, 0.0
        %v319 = vmul.f32 %v280, %v303
        %v320 = vmul.f32 %v282, %v304
        %v321 = vmul.f32 %v284, %v305
        %v322 = vmul.f32 %v286, %v306
        %v323 = vmul.f32 %v288, %v307
        %v324 = vmul.f32 %v290, %v308
        %v325 = vmul.f32 %v292, %v309
        %v326 = vmul.f32 %v294, %v310
        %v327 = vsel %vm311, %v303, %v319
        %v328 = vsel %vm312, %v304, %v320
        %v329 = vsel %vm313, %v305, %v321
        %v330 = vsel %vm314, %v306, %v322
        %v331 = vsel %vm315, %v307, %v323
        %v332 = vsel %vm316, %v308, %v324
        %v333 = vsel %vm317, %v309, %v325
        %v334 = vsel %vm318, %v310, %v326
        %v335 = vmul.f32 %v244, %v327
        %v336 = vmul.f32 %v246, %v328
        %v337 = vmul.f32 %v249, %v329
        %v338 = vmul.f32 %v251, %v330
        %v339 = vmul.f32 %v254, %v331
        %v340 = vmul.f32 %v256, %v332
        %v341 = vmul.f32 %v259, %v333
        %v342 = vmul.f32 %v261, %v334
        %v343 = vpack.c.bf16 %v335, %v335
        %v344 = vpack.c.bf16 %v336, %v336
        %v345 = vpack.c.bf16 %v337, %v337
        %v346 = vpack.c.bf16 %v338, %v338
        %v347 = vpack.c.bf16 %v339, %v339
        %v348 = vpack.c.bf16 %v340, %v340
        %v349 = vpack.c.bf16 %v341, %v341
        %v350 = vpack.c.bf16 %v342, %v342
        %351 = vst [vmem:[%s164] sm:$0xf] %v343
        %352 = vst [vmem:[%s164 + $0x4] sm:$0xf] %v344
        %353 = vst [vmem:[%s164 + $0x8] sm:$0xf] %v345
        %354 = vst [vmem:[%s164 + $0xc] sm:$0xf] %v346
        %355 = vst [vmem:[%s164 + $0x10] sm:$0xf] %v347
        %356 = vst [vmem:[%s164 + $0x14] sm:$0xf] %v348
        %357 = vst [vmem:[%s164 + $0x18] sm:$0xf] %v349
        %358 = vst [vmem:[%s164 + $0x1c] sm:$0xf] %v350
        %s359 = sand.u32 %s93, 1
        %s360 = scalar_lea.sflag [#allocation3], %s359
        %s361 = sand.u32 %s93, 1
        %s362 = smul.addr %s361, 32
        %s363 = scalar_lea.vmem [#allocation2], %s362
        // Predicated region
        $region33: #{tpu_custom_call.1} parent=31 // pred_check
          %p364 = pneg %p103
        $region34: #{tpu_custom_call.1} parent=31 // pred_check_branch
          %366 = sbr.rel (%p364) target = $region36
        $region35: #{tpu_custom_call.1} parent=31 // pred_region
          %s367 = smul.u32 8, %s17
          %369 = vsyncadd %s360, 0
          %s370 = smul.addr %s367, 4
          %s371 = scalar_lea.hbm %s3, %s370
          %s372 = sshll.u32 %s363, 4
          %s373 = int_to_ptr.vmem [resolvable:$true] %s372
          %s374 = sshll.u32 %s371, 4
          %s375 = int_to_ptr.hbm [resolvable:$true] %s374
          %380 = dma.vmem_to_hbm [thread:$0]  %s373, 512, %s375, %s360, 64, 64, 4
        $region36: #{tpu_custom_call.1} parent=31 // pred_fallthru
          _
      $region32: #{tpu_custom_call.1} parent=5 // pred_fallthru
        _
      %p381 = scmp.le.s32.totalorder 2, %s12
      // Predicated region
      $region37: #{tpu_custom_call.1} parent=5 // pred_check
        %p382 = pneg %p381
      $region38: #{tpu_custom_call.1} parent=5 // pred_check_branch
        %384 = sbr.rel (%p382) target = $region40
      $region39: #{tpu_custom_call.1} parent=5 // pred_region
        %s385 = ssub.s32 %s12, 2
        // Predicated region
        $region41: #{tpu_custom_call.1} parent=39 // pred_check
          %p386 = pneg %p109
        $region42: #{tpu_custom_call.1} parent=39 // pred_check_branch
          %388 = sbr.rel (%p386) target = $region44
        $region43: #{tpu_custom_call.1} parent=39 // pred_region
          %s389 = sand.u32 %s94, 1
          %s390 = scalar_lea.sflag [#allocation3], %s389
          %s391 = sand.u32 %s94, 1
          %s392 = smul.addr %s391, 32
          %s393 = scalar_lea.vmem [#allocation2], %s392
          %395 = dma.done %s390, 512
        $region44: #{tpu_custom_call.1} parent=39 // pred_fallthru
          _
      $region40: #{tpu_custom_call.1} parent=5 // pred_fallthru
        _
    $region6: #{tpu_custom_call.1} parent=1 // loop_footer
      %s16 = sadd.s32 1, %s12
    $region7: #{tpu_custom_call.1} parent=1 // loop_footer_branch
      %11 = sbr.rel target = $region3
    $region8: #{tpu_custom_call.1} parent=1 // loop_exit
      _
    %396 = vsyncpa [#allocation3], 1
    %s397 = scalar_lea.sflag [#allocation3], 1
    %398 = vsyncpa %s397, 1

</llo_original>
